<compile_context>
chip_gen: v7x
topology: tpu7x:2x2x1
jax: 0.10.0
libtpu: 0.0.40
codegen_flags: <defaults>
</compile_context>

<pallas_src>
import functools

import jax
import jax.numpy as jnp
from jax.experimental import pallas as pl
from jax.experimental.pallas import tpu as pltpu


def _channel_attention_kernel(x_ref, w1t_ref, w2t_ref, o_ref,
                              sum_ref, max_ref, *, hw):
    """Grid: (batch_blocks, spatial_blocks).

    x_ref   : (TB, C, THW)  input tile, native dtype
    w1t_ref : (C, Ch)       fc1 weight, pre-transposed
    w2t_ref : (Ch, C)       fc2 weight, pre-transposed
    o_ref   : (1, TB, C)    sigmoid(channel attention)
    sum_ref : (TB, C) f32   running spatial sum (VMEM scratch)
    max_ref : (TB, C) f32   running spatial max (VMEM scratch)
    """
    k = pl.program_id(1)

    @pl.when(k == 0)
    def _init():
        sum_ref[...] = jnp.zeros_like(sum_ref)
        max_ref[...] = jnp.full_like(max_ref, -jnp.inf)

    x = x_ref[...].astype(jnp.float32)                     # (TB, C, THW) f32 accum
    thw = x.shape[-1]

    if hw % thw != 0:
        # Mask the garbage lanes of the final partial spatial tile.
        lane = jax.lax.broadcasted_iota(jnp.int32, (1, 1, thw), 2) + k * thw
        valid = lane < hw
        x_sum = jnp.where(valid, x, 0.0)
        x_max = jnp.where(valid, x, -jnp.inf)
    else:
        x_sum = x
        x_max = x

    sum_ref[...] += jnp.sum(x_sum, axis=-1)                              # (TB, C)
    max_ref[...] = jnp.maximum(max_ref[...], jnp.max(x_max, axis=-1))    # (TB, C)

    @pl.when(k == pl.num_programs(1) - 1)
    def _finalize():
        avg = sum_ref[...] * (1.0 / hw)                    # (TB, C)
        mx = max_ref[...]                                  # (TB, C)
        # Fuse avg- and max-paths into a single pair of (tiny) MXU matmuls.
        pooled = jnp.concatenate([avg, mx], axis=0)        # (2*TB, C)
        h = jnp.maximum(
            jnp.dot(pooled, w1t_ref[...],
                    preferred_element_type=jnp.float32), 0.0)            # (2*TB, Ch)
        y = jnp.dot(h, w2t_ref[...],
                    preferred_element_type=jnp.float32)                  # (2*TB, C)
        tb = avg.shape[0]
        out = jax.nn.sigmoid(y[:tb] + y[tb:])              # (TB, C)
        o_ref[0] = out.astype(o_ref.dtype)


def _choose_tb(batch):
    """Batch rows per grid step: batch the MLP, but keep >=2 batch blocks so
    the 'parallel' grid axis can still be split across TensorCores."""
    for tb in (8, 4, 2, 1):
        if batch % tb == 0 and batch // tb >= 2:
            return tb
    return batch


def _choose_thw(hw, per_lane_bytes, budget_bytes):
    """Spatial tile width in lanes: multiple of 128, bounded by a VMEM budget."""
    max_lanes = max(128, (budget_bytes // max(per_lane_bytes, 1)) // 128 * 128)
    if hw <= max_lanes:
        return hw          # single full-width tile (full dim needs no alignment)
    return max_lanes


@functools.partial(jax.jit, static_argnames=("block_budget_bytes",))
def channel_attention(x_nchw, w1, w2, *, block_budget_bytes=4 * 1024 * 1024):
    """CBAM ChannelAttention forward.

    x_nchw : (B, C, H, W)  any float dtype (streamed in its native dtype)
    w1     : (C // 16, C)  fc1 1x1-conv weight (squeezed)
    w2     : (C, C // 16)  fc2 1x1-conv weight (squeezed)
    Returns (B, C, 1, 1), same dtype as x_nchw.
    """
    B, C, H, W = x_nchw.shape
    HW = H * W
    hidden = w1.shape[0]

    TB = _choose_tb(B)
    Bt = B // TB
    x = x_nchw.reshape(B, C, HW)                           # no copy, no cast
    itemsize = x.dtype.itemsize
    THW = _choose_thw(HW, TB * C * itemsize, block_budget_bytes)
    k_steps = pl.cdiv(HW, THW)

    # Pre-transposed weights so the (2*TB, C) pooled rows feed the MXU directly.
    w1t = w1.astype(jnp.float32).T                         # (C, Ch)
    w2t = w2.astype(jnp.float32).T                         # (Ch, C)

    block_bytes = TB * C * THW * itemsize
    vmem_limit = int(min(64 * 1024 * 1024,
                         max(32 * 1024 * 1024, 4 * block_bytes + (4 << 20))))

    cost = pl.CostEstimate(
        flops=2 * B * C * HW + 8 * B * C * hidden,
        transcendentals=B * C,
        bytes_accessed=(x.size * itemsize + (w1.size + w2.size) * 4
                        + B * C * itemsize),
    )

    out = pl.pallas_call(
        functools.partial(_channel_attention_kernel, hw=HW),
        out_shape=jax.ShapeDtypeStruct((Bt, TB, C), x_nchw.dtype),
        grid_spec=pltpu.PrefetchScalarGridSpec(
            num_scalar_prefetch=0,
            grid=(Bt, k_steps),
            in_specs=[
                pl.BlockSpec((TB, C, THW), lambda b, k: (b, 0, k)),
                pl.BlockSpec((C, hidden), lambda b, k: (0, 0)),
                pl.BlockSpec((hidden, C), lambda b, k: (0, 0)),
            ],
            out_specs=pl.BlockSpec((1, TB, C), lambda b, k: (b, 0, 0)),
            scratch_shapes=[
                pltpu.VMEM((TB, C), jnp.float32),   # running sum
                pltpu.VMEM((TB, C), jnp.float32),   # running max
            ],
        ),
        compiler_params=pltpu.CompilerParams(
            dimension_semantics=("parallel", "arbitrary"),
            vmem_limit_bytes=vmem_limit,
        ),
        cost_estimate=cost,
    )(x, w1t, w2t)

    return out.reshape(B, C)[:, :, None, None]


def channel_attention_ref(x_nchw, w1, w2):
    """Plain-JAX reference matching the PyTorch module semantics."""
    xf = x_nchw.astype(jnp.float32)
    avg = jnp.mean(xf, axis=(2, 3))                        # (B, C)
    mx = jnp.max(xf, axis=(2, 3))                          # (B, C)

    def mlp(v):                                            # (B, C)
        h = jnp.maximum(v @ w1.T, 0.0)                     # (B, Ch)
        return h @ w2.T                                    # (B, C)

    out = jax.nn.sigmoid(mlp(avg) + mlp(mx))
    return out[:, :, None, None]


if __name__ == "__main__":
    # Small shapes consistent with the module (in_planes >= 16 so C//16 >= 1).
    B, C, H, W = 2, 32, 16, 16
    hidden = C // 16

    key = jax.random.PRNGKey(0)
    kx, k1, k2 = jax.random.split(key, 3)

    x = jax.random.normal(kx, (B, C, H, W), dtype=jnp.float32)
    w1 = 0.1 * jax.random.normal(k1, (hidden, C), dtype=jnp.float32)   # fc1
    w2 = 0.1 * jax.random.normal(k2, (C, hidden), dtype=jnp.float32)   # fc2

    y = channel_attention(x, w1, w2)
    jax.block_until_ready(y)
    y_ref = channel_attention_ref(x, w1, w2)
    assert y.shape == (B, C, 1, 1)
    assert jnp.allclose(y, y_ref, atol=1e-5, rtol=1e-5), "mismatch (f32 path)"

    # Second (small) config: exercises batch blocking, spatial tiling with a
    # masked partial final tile, and native bf16 streaming.
    B2, C2, H2, W2 = 4, 32, 20, 20                         # HW = 400 (ragged)
    kx2, k1b, k2b = jax.random.split(jax.random.PRNGKey(1), 3)
    x2 = jax.random.normal(kx2, (B2, C2, H2, W2),
                           dtype=jnp.float32).astype(jnp.bfloat16)
    w1b = 0.1 * jax.random.normal(k1b, (C2 // 16, C2), dtype=jnp.float32)
    w2b = 0.1 * jax.random.normal(k2b, (C2, C2 // 16), dtype=jnp.float32)
    y2 = channel_attention(x2, w1b, w2b, block_budget_bytes=128 * 1024)
    jax.block_until_ready(y2)
    y2_ref = channel_attention_ref(x2, w1b, w2b)
    assert y2.shape == (B2, C2, 1, 1)
    assert jnp.allclose(y2.astype(jnp.float32), y2_ref, atol=2e-2, rtol=2e-2), \
        "mismatch (tiled bf16 path)"

    print("KERNEL_OK")
</pallas_src>

<mosaic_0001>
module attributes {stable_mosaic.version = 11 : i64} {
  func.func @_channel_attention_kernel(%arg0: i32, %arg1: i32, %arg2: memref<1x32x256xf32, #tpu.memory_space<vmem>>, %arg3: memref<32x2xf32, #tpu.memory_space<vmem>>, %arg4: memref<2x32xf32, #tpu.memory_space<vmem>>, %arg5: memref<1x1x32xf32, #tpu.memory_space<vmem>>, %arg6: memref<1x32xf32, #tpu.memory_space<vmem>>, %arg7: memref<1x32xf32, #tpu.memory_space<vmem>>) attributes {dimension_semantics = [#tpu.dimension_semantics<parallel>, #tpu.dimension_semantics<arbitrary>], iteration_bounds = array<i64: 2, 1>, scalar_prefetch = 0 : i64, scratch_operands = 2 : i64, tpu.core_type = #tpu.core_type<tc>, window_params = [{transform_indices = @transform_0, window_bounds = array<i64: 1, 32, 256>}, {pipeline_mode = #tpu.pipeline_mode<synchronous>, transform_indices = @transform_1, window_bounds = array<i64: 32, 2>}, {pipeline_mode = #tpu.pipeline_mode<synchronous>, transform_indices = @transform_2, window_bounds = array<i64: 2, 32>}, {transform_indices = @transform_3, window_bounds = array<i64: 1, 1, 32>}]} {
    %c0_i32 = arith.constant 0 : i32
    %0 = arith.cmpi eq, %arg1, %c0_i32 : i32
    %1 = arith.extui %0 : i1 to i32
    %c0_i32_0 = arith.constant 0 : i32
    %2 = arith.cmpi ne, %1, %c0_i32_0 : i32
    scf.if %2 {
      %cst_14 = arith.constant 0.000000e+00 : f32
      %15 = vector.broadcast %cst_14 : f32 to vector<1x32xf32>
      %c0_15 = arith.constant 0 : index
      %c0_16 = arith.constant 0 : index
      %16 = vector.load %arg6[%c0_15, %c0_16] : memref<1x32xf32, #tpu.memory_space<vmem>>, vector<1x32xf32>
      tpu.vector_store %arg6[%c0_15, %c0_16], %15 {strides = array<i32>} : memref<1x32xf32, #tpu.memory_space<vmem>>, vector<1x32xf32>,
      %cst_17 = arith.constant 0xFF800000 : f32
      %17 = vector.broadcast %cst_17 : f32 to vector<1x32xf32>
      %c0_18 = arith.constant 0 : index
      %c0_19 = arith.constant 0 : index
      %18 = vector.load %arg7[%c0_18, %c0_19] : memref<1x32xf32, #tpu.memory_space<vmem>>, vector<1x32xf32>
      tpu.vector_store %arg7[%c0_18, %c0_19], %17 {strides = array<i32>} : memref<1x32xf32, #tpu.memory_space<vmem>>, vector<1x32xf32>,
    } else {
    }
    %c0 = arith.constant 0 : index
    %c0_1 = arith.constant 0 : index
    %c0_2 = arith.constant 0 : index
    %3 = vector.load %arg2[%c0, %c0_1, %c0_2] : memref<1x32x256xf32, #tpu.memory_space<vmem>>, vector<1x32x256xf32>
    %c0_3 = arith.constant 0 : index
    %c0_4 = arith.constant 0 : index
    %4 = vector.load %arg6[%c0_3, %c0_4] : memref<1x32xf32, #tpu.memory_space<vmem>>, vector<1x32xf32>
    %cst = arith.constant dense<0.000000e+00> : vector<1x32xf32>
    %5 = vector.multi_reduction <add>, %3, %cst [2] : vector<1x32x256xf32> to vector<1x32xf32>
    %6 = arith.addf %4, %5 : vector<1x32xf32>
    %c0_5 = arith.constant 0 : index
    %c0_6 = arith.constant 0 : index
    %7 = vector.load %arg6[%c0_5, %c0_6] : memref<1x32xf32, #tpu.memory_space<vmem>>, vector<1x32xf32>
    tpu.vector_store %arg6[%c0_5, %c0_6], %6 {strides = array<i32>} : memref<1x32xf32, #tpu.memory_space<vmem>>, vector<1x32xf32>,
    %c0_7 = arith.constant 0 : index
    %c0_8 = arith.constant 0 : index
    %8 = vector.load %arg7[%c0_7, %c0_8] : memref<1x32xf32, #tpu.memory_space<vmem>>, vector<1x32xf32>
    %cst_9 = arith.constant dense<0xFF800000> : vector<1x32xf32>
    %9 = vector.multi_reduction <maximumf>, %3, %cst_9 [2] : vector<1x32x256xf32> to vector<1x32xf32>
    %10 = arith.maximumf %8, %9 : vector<1x32xf32>
    %c0_10 = arith.constant 0 : index
    %c0_11 = arith.constant 0 : index
    %11 = vector.load %arg7[%c0_10, %c0_11] : memref<1x32xf32, #tpu.memory_space<vmem>>, vector<1x32xf32>
    tpu.vector_store %arg7[%c0_10, %c0_11], %10 {strides = array<i32>} : memref<1x32xf32, #tpu.memory_space<vmem>>, vector<1x32xf32>,
    %c0_i32_12 = arith.constant 0 : i32
    %12 = arith.cmpi eq, %arg1, %c0_i32_12 : i32
    %13 = arith.extui %12 : i1 to i32
    %c0_i32_13 = arith.constant 0 : i32
    %14 = arith.cmpi ne, %13, %c0_i32_13 : i32
    scf.if %14 {
      %c0_14 = arith.constant 0 : index
      %c0_15 = arith.constant 0 : index
      %15 = vector.load %arg6[%c0_14, %c0_15] : memref<1x32xf32, #tpu.memory_space<vmem>>, vector<1x32xf32>
      %cst_16 = arith.constant 3.906250e-03 : f32
      %16 = vector.broadcast %cst_16 : f32 to vector<1x32xf32>
      %17 = arith.mulf %15, %16 : vector<1x32xf32>
      %c0_17 = arith.constant 0 : index
      %c0_18 = arith.constant 0 : index
      %18 = vector.load %arg7[%c0_17, %c0_18] : memref<1x32xf32, #tpu.memory_space<vmem>>, vector<1x32xf32>
      %19 = tpu.concatenate %17, %18 in 0 : vector<1x32xf32>, vector<1x32xf32> -> vector<2x32xf32>
      %c0_19 = arith.constant 0 : index
      %c0_20 = arith.constant 0 : index
      %20 = vector.load %arg3[%c0_19, %c0_20] : memref<32x2xf32, #tpu.memory_space<vmem>>, vector<32x2xf32>
      %cst_21 = arith.constant dense<0.000000e+00> : vector<2x2xf32>
      %21 = tpu.matmul %19, %20, %cst_21 {dimension_numbers = #tpu.dot_dimension_numbers<[1], [0], [0], [1], [0, 0, 1, 1], [], []>} : vector<2x32xf32>, vector<32x2xf32>, vector<2x2xf32> -> vector<2x2xf32>
      %cst_22 = arith.constant 0.000000e+00 : f32
      %22 = vector.broadcast %cst_22 : f32 to vector<2x2xf32>
      %23 = arith.maximumf %21, %22 : vector<2x2xf32>
      %c0_23 = arith.constant 0 : index
      %c0_24 = arith.constant 0 : index
      %24 = vector.load %arg4[%c0_23, %c0_24] : memref<2x32xf32, #tpu.memory_space<vmem>>, vector<2x32xf32>
      %cst_25 = arith.constant dense<0.000000e+00> : vector<2x32xf32>
      %25 = tpu.matmul %23, %24, %cst_25 {dimension_numbers = #tpu.dot_dimension_numbers<[1], [0], [0], [1], [0, 0, 1, 1], [], []>} : vector<2x2xf32>, vector<2x32xf32>, vector<2x32xf32> -> vector<2x32xf32>
      %26 = vector.extract_strided_slice %25 {offsets = [0, 0], sizes = [1, 32], strides = [1, 1]} : vector<2x32xf32> to vector<1x32xf32>
      %27 = vector.extract_strided_slice %25 {offsets = [1, 0], sizes = [1, 32], strides = [1, 1]} : vector<2x32xf32> to vector<1x32xf32>
      %28 = arith.addf %26, %27 : vector<1x32xf32>
      %29 = arith.negf %28 : vector<1x32xf32>
      %30 = math.exp %29 : vector<1x32xf32>
      %cst_26 = arith.constant 1.000000e+00 : f32
      %31 = vector.broadcast %cst_26 : f32 to vector<1x32xf32>
      %32 = arith.addf %31, %30 : vector<1x32xf32>
      %33 = arith.divf %31, %32 : vector<1x32xf32>
      %c0_27 = arith.constant 0 : index
      %c0_28 = arith.constant 0 : index
      %c0_29 = arith.constant 0 : index
      %34 = vector.load %arg5[%c0_27, %c0_28, %c0_29] : memref<1x1x32xf32, #tpu.memory_space<vmem>>, vector<1x1x32xf32>
      %35 = vector.shape_cast %34 : vector<1x1x32xf32> to vector<1x32xf32>
      %36 = vector.shape_cast %33 : vector<1x32xf32> to vector<1x1x32xf32>
      tpu.vector_store %arg5[%c0_27, %c0_28, %c0_29], %36 {strides = array<i32>} : memref<1x1x32xf32, #tpu.memory_space<vmem>>, vector<1x1x32xf32>,
    } else {
    }
    return
  }
  func.func @transform_0(%arg0: i32, %arg1: i32) -> (i32, i32, i32) {
    %c0_i32 = arith.constant 0 : i32
    %c0_i32_0 = arith.constant 0 : i32
    return %arg0, %c0_i32, %arg1 : i32, i32, i32
  }
  func.func @transform_1(%arg0: i32, %arg1: i32) -> (i32, i32) {
    %c0_i32 = arith.constant 0 : i32
    %c0_i32_0 = arith.constant 0 : i32
    %c0_i32_1 = arith.constant 0 : i32
    return %c0_i32, %c0_i32_0 : i32, i32
  }
  func.func @transform_2(%arg0: i32, %arg1: i32) -> (i32, i32) {
    %c0_i32 = arith.constant 0 : i32
    %c0_i32_0 = arith.constant 0 : i32
    %c0_i32_1 = arith.constant 0 : i32
    return %c0_i32, %c0_i32_0 : i32, i32
  }
  func.func @transform_3(%arg0: i32, %arg1: i32) -> (i32, i32, i32) {
    %c0_i32 = arith.constant 0 : i32
    %c0_i32_0 = arith.constant 0 : i32
    %c0_i32_1 = arith.constant 0 : i32
    return %arg0, %c0_i32, %c0_i32_0 : i32, i32, i32
  }
}

</mosaic_0001>

<llo_original>
// kernel: channel_attention.1
$region0: #{channel_attention.1}
  #allocation0 [shape = 'u32[]', space=smem, size = 0x4, offset = 0x4, fixed_abs, tag = 'smem constant byte address 0x4 - core index']
  #allocation1 [shape = 'u32[144,128]{1,0:T(1,128)}', space=vmem, size = 0x12000, scoped, tag = 'internal scratch']
  #allocation2 [shape = 'f32[1,32]{1,0:T(1,128)}', space=vmem, size = 0x200, scoped, tag = 'scratch operand']
  #allocation3 [shape = 'f32[1,32]{1,0:T(1,128)}', space=vmem, size = 0x200, scoped, tag = 'scratch operand']
  %s0 = inlined_call_operand.vmem [shape: f32[2,32,256], index: 0, kind: input, shape index: {}]
  %s1 = inlined_call_operand.vmem [shape: f32[32,2], index: 1, kind: input, shape index: {}]
  %s2 = inlined_call_operand.vmem [shape: f32[2,32], index: 2, kind: input, shape index: {}]
  %s3 = inlined_call_operand.hbm [shape: f32[2,1,32], index: 3, kind: output, shape index: {}]
  %s4 = sld [smem:[#allocation0]]
  $region53: #{channel_attention.1} parent=0
    _
  %s6 = ssub.s32 1, %s4
  %s7 = scalar_select 0, %s6, %s4
  $region1: #{channel_attention.1} parent=0
    #allocation4 [shape = 'u8[1024]{0}', space=vmem, size = 0x400, scoped, tag = 'output window, operand 0']
    #allocation5 [shape = 's32[2]{0}', space=sflag, size = 0x8, scoped, tag = 'scoped memory for channel_attention.1']
    %8 = vsyncpa [#allocation5], 0
    %s9 = scalar_lea.sflag [#allocation5], 1
    %10 = vsyncpa %s9, 0
    loop: start=0, step=1, limit=4
    $region2: #{channel_attention.1} parent=1 // loop_pre_header
      _
    $region3: #{channel_attention.1} parent=1 // loop_header
      %s12 = sphi 0, %s16
      %p13 = scmp.ge.s32.totalorder %s12, 4
      %s19 = sphi 0, %s31
      %s20 = sphi 0, %s27
      %s21 = sphi 0, %s19
      %s22 = sphi 0, %s20
      %s23 = sphi 0, %s21
      %s24 = sphi 0, %s22
      %s36 = sphi 0, %s38
      %s39 = sphi 0, %s36
      %s40 = sphi 0, %s39
      %s56 = sphi 0, %s40
      %s60 = sphi 0, %s60
      %s62 = sphi 0, %s60
      %s63 = sphi 0, %s62
      %s77 = sphi 0, %s63
      %s81 = sphi 0, %s81
      %s83 = sphi 0, %s81
      %s84 = sphi 0, %s83
      %s98 = sphi 0, %s84
      %s104 = sphi 0, %s106
      %s107 = sphi 0, %s104
      %s108 = sphi 0, %s107
      %s124 = sphi 0, %s108
    $region4: #{channel_attention.1} parent=1 // loop_header_branch
      %15 = sbr.rel (%p13) target = $region8
    $region5: #{channel_attention.1} parent=1 // loop_body
      %s17 = ssub.s32 %s12, 1
      %s18 = ssub.s32 %s12, 2
      %s25 = sadd.s32 1, %s20
      %p26 = scmp.ge.s32.totalorder %s25, 1
      %s27 = scalar_select %p26, 0, %s25
      %s28 = sadd.s32 1, %s19
      %s29 = scalar_select %p26, %s28, %s19
      %p30 = scmp.ge.s32.totalorder %s29, 2
      %s31 = scalar_select %p30, 0, %s29
      %s32 = ssub.s32 %s19, %s31
      %s33 = ssub.s32 %s20, %s27
      %s34 = sor.u32 %s32, %s33
      %p35 = scmp.eq.s32.totalorder %s34, 0
      %s37 = sadd.s32 %s36, 1
      %s38 = scalar_select %p35, %s36, %s37
      %p41 = pneg %p35
      %p42 = scmp.eq.s32.totalorder %s12, 1
      %p43 = por %p41, %p42
      %p44 = scmp.ne.s32.totalorder %s36, %s39
      %p45 = scmp.eq.s32.totalorder %s12, 0
      %p46 = por %p44, %p45
      %p47 = scmp.ne.s32.totalorder %s36, %s39
      %p48 = scmp.eq.s32.totalorder %s17, 1
      %p49 = por %p47, %p48
      %p50 = scmp.ne.s32.totalorder %s39, %s40
      %p51 = scmp.eq.s32.totalorder %s17, 0
      %p52 = por %p50, %p51
      %p53 = scmp.ne.s32.totalorder %s39, %s40
      %p54 = scmp.eq.s32.totalorder %s18, 1
      %p55 = por %p53, %p54
      %p57 = scmp.ne.s32.totalorder %s40, %s56
      %p58 = scmp.eq.s32.totalorder %s18, 0
      %p59 = por %p57, %p58
      %s61 = sadd.s32 %s60, 1
      %p64 = scmp.eq.s32.totalorder %s12, 1
      %p65 = scmp.ne.s32.totalorder %s60, %s62
      %p66 = scmp.eq.s32.totalorder %s12, 0
      %p67 = por %p65, %p66
      %p68 = scmp.ne.s32.totalorder %s60, %s62
      %p69 = scmp.eq.s32.totalorder %s17, 1
      %p70 = por %p68, %p69
      %p71 = scmp.ne.s32.totalorder %s62, %s63
      %p72 = scmp.eq.s32.totalorder %s17, 0
      %p73 = por %p71, %p72
      %p74 = scmp.ne.s32.totalorder %s62, %s63
      %p75 = scmp.eq.s32.totalorder %s18, 1
      %p76 = por %p74, %p75
      %p78 = scmp.ne.s32.totalorder %s63, %s77
      %p79 = scmp.eq.s32.totalorder %s18, 0
      %p80 = por %p78, %p79
      %s82 = sadd.s32 %s81, 1
      %p85 = scmp.eq.s32.totalorder %s12, 1
      %p86 = scmp.ne.s32.totalorder %s81, %s83
      %p87 = scmp.eq.s32.totalorder %s12, 0
      %p88 = por %p86, %p87
      %p89 = scmp.ne.s32.totalorder %s81, %s83
      %p90 = scmp.eq.s32.totalorder %s17, 1
      %p91 = por %p89, %p90
      %p92 = scmp.ne.s32.totalorder %s83, %s84
      %p93 = scmp.eq.s32.totalorder %s17, 0
      %p94 = por %p92, %p93
      %p95 = scmp.ne.s32.totalorder %s83, %s84
      %p96 = scmp.eq.s32.totalorder %s18, 1
      %p97 = por %p95, %p96
      %p99 = scmp.ne.s32.totalorder %s84, %s98
      %p100 = scmp.eq.s32.totalorder %s18, 0
      %p101 = por %p99, %p100
      %s102 = ssub.s32 %s19, %s31
      %p103 = scmp.eq.s32.totalorder %s102, 0
      %s105 = sadd.s32 %s104, 1
      %s106 = scalar_select %p103, %s104, %s105
      %p109 = pneg %p103
      %p110 = scmp.eq.s32.totalorder %s12, 1
      %p111 = por %p109, %p110
      %p112 = scmp.ne.s32.totalorder %s104, %s107
      %p113 = scmp.eq.s32.totalorder %s12, 0
      %p114 = por %p112, %p113
      %p115 = scmp.ne.s32.totalorder %s104, %s107
      %p116 = scmp.eq.s32.totalorder %s17, 1
      %p117 = por %p115, %p116
      %p118 = scmp.ne.s32.totalorder %s107, %s108
      %p119 = scmp.eq.s32.totalorder %s17, 0
      %p120 = por %p118, %p119
      %p121 = scmp.ne.s32.totalorder %s107, %s108
      %p122 = scmp.eq.s32.totalorder %s18, 1
      %p123 = por %p121, %p122
      %p125 = scmp.ne.s32.totalorder %s108, %s124
      %p126 = scmp.eq.s32.totalorder %s18, 0
      %p127 = por %p125, %p126
      %p128 = scmp.le.s32.totalorder 1, %s12
      %p129 = scmp.lt.s32.totalorder %s12, 3
      %p130 = pnand %p128, %p129
      %p131 = pneg %p130
      // Predicated region
      $region9: #{channel_attention.1} parent=5 // pred_check
        _
      $region10: #{channel_attention.1} parent=5 // pred_check_branch
        %133 = sbr.rel (%p130) target = $region12
      $region11: #{channel_attention.1} parent=5 // pred_region
        %s134 = ssub.s32 %s12, 1
        // Predicated region
        $region13: #{channel_attention.1} parent=11 // pred_check
          %p135 = pneg %p73
        $region14: #{channel_attention.1} parent=11 // pred_check_branch
          %137 = sbr.rel (%p135) target = $region16
        $region15: #{channel_attention.1} parent=11 // pred_region
          _
        $region16: #{channel_attention.1} parent=11 // pred_fallthru
          _
        // Predicated region
        $region17: #{channel_attention.1} parent=11 // pred_check
          %p138 = pneg %p94
        $region18: #{channel_attention.1} parent=11 // pred_check_branch
          %140 = sbr.rel (%p138) target = $region20
        $region19: #{channel_attention.1} parent=11 // pred_region
          _
        $region20: #{channel_attention.1} parent=11 // pred_fallthru
          _
      $region12: #{channel_attention.1} parent=5 // pred_fallthru
        _
      %p141 = scmp.lt.s32.totalorder %s12, 2
      // Predicated region
      $region21: #{channel_attention.1} parent=5 // pred_check
        %p142 = pneg %p141
      $region22: #{channel_attention.1} parent=5 // pred_check_branch
        %144 = sbr.rel (%p142) target = $region24
      $region23: #{channel_attention.1} parent=5 // pred_region
        // Predicated region
        $region25: #{channel_attention.1} parent=23 // pred_check
          %p145 = pneg %p46
        $region26: #{channel_attention.1} parent=23 // pred_check_branch
          %147 = sbr.rel (%p145) target = $region28
        $region27: #{channel_attention.1} parent=23 // pred_region
          %s148 = smul.u32 2, %s20
          %p149 = scmp.lt.s32.totalorder %s19, 1
          %s150 = scalar_select %p149, %s19, 1
          %p151 = scmp.lt.s32.totalorder %s148, 1
          %s152 = scalar_select %p151, %s148, 1
          %s153 = smul.addr %s150, 8
          %s154 = sadd.s32 %s152, %s153
          %s155 = smul.addr %s154, 8
          %s156 = scalar_lea.vmem %s0, %s155
          %s157 = smul.u32 2, %s20
        $region28: #{channel_attention.1} parent=23 // pred_fallthru
          _
      $region24: #{channel_attention.1} parent=5 // pred_fallthru
        _
      %p158 = scmp.le.s32.totalorder 1, %s12
      %p159 = scmp.lt.s32.totalorder %s12, 3
      %p160 = pnand %p158, %p159
      %p161 = pneg %p160
      // Predicated region
      $region29: #{channel_attention.1} parent=5 // pred_check
        _
      $region30: #{channel_attention.1} parent=5 // pred_check_branch
        %163 = sbr.rel (%p160) target = $region32
      $region31: #{channel_attention.1} parent=5 // pred_region
        %s164 = ssub.s32 %s12, 1
        %s165 = smul.u32 2, %s22
        %p166 = scmp.lt.s32.totalorder %s21, 1
        %s167 = scalar_select %p166, %s21, 1
        %p168 = scmp.lt.s32.totalorder %s165, 1
        %s169 = scalar_select %p168, %s165, 1
        %s170 = smul.addr %s167, 8
        %s171 = sadd.s32 %s169, %s170
        %s172 = smul.addr %s171, 8
        %s173 = scalar_lea.vmem %s0, %s172
        %p174 = pneg %p52
        %p175 = pneg %p49
        %p176 = pneg %p73
        %p177 = pneg %p70
        %p178 = pneg %p94
        %p179 = pneg %p91
        %p180 = pneg %p120
        %p181 = pneg %p117
        %s182 = sand.u32 %s107, 1
        %s183 = scalar_lea.sflag [#allocation5], %s182
        %s184 = sand.u32 %s107, 1
        %s185 = scalar_lea.vmem [#allocation4], %s184
        %s186 = smul.u32 2, %s22
        %p187 = scmp.lt.s32.totalorder %s21, 1
        %s188 = scalar_select %p187, %s21, 1
        %p189 = scmp.lt.s32.totalorder %s186, 1
        %s190 = scalar_select %p189, %s186, 1
        %s191 = smul.addr %s188, 8
        %s192 = sadd.s32 %s190, %s191
        %s193 = smul.addr %s192, 8
        %s194 = scalar_lea.vmem %s0, %s193
        %s195 = smul.u32 2, %s22
        %p196 = scmp.eq.s32.totalorder %s22, 0
        // Predicated region
        $region33: #{channel_attention.1} parent=31 // pred_check
          %p197 = pneg %p196
        $region34: #{channel_attention.1} parent=31 // pred_check_branch
          %199 = sbr.rel (%p197) target = $region36
        $region35: #{channel_attention.1} parent=31 // pred_region
          %vm200 = vcmask 253952
          %201 = vst.msk [vmem:[#allocation2] sm:$0x1] %vm200, 0.0
          %202 = vst.msk [vmem:[#allocation3] sm:$0x1] %vm200, -inf
        $region36: #{channel_attention.1} parent=31 // pred_fallthru
          _
        %v203 = vld [vmem:[%s194] sm:$0xff]
        %v204 = vld [vmem:[%s194 + $0x8] sm:$0xff]
        %v205 = vld [vmem:[%s194 + $0x10] sm:$0xff]
        %v206 = vld [vmem:[%s194 + $0x18] sm:$0xff]
        %v207 = vld [vmem:[%s194 + $0x20] sm:$0xff]
        %v208 = vld [vmem:[%s194 + $0x28] sm:$0xff]
        %v209 = vld [vmem:[%s194 + $0x30] sm:$0xff]
        %v210 = vld [vmem:[%s194 + $0x38] sm:$0xff]
        %v211 = vld [vmem:[#allocation2] sm:$0x1]
        %v212 = vadd.f32 %v203, %v204
        %213 = vadd.xlane.f32.xlu0 %v212
        %v214 = vpop.xlane.xlu0 %213
        %v215 = vadd.f32 %v205, %v206
        %216 = vadd.xlane.f32.xlu0 %v215
        %v217 = vpop.xlane.xlu0 %216
        %v218 = vadd.f32 %v207, %v208
        %219 = vadd.xlane.f32.xlu0 %v218
        %v220 = vpop.xlane.xlu0 %219
        %v221 = vadd.f32 %v209, %v210
        %222 = vadd.xlane.f32.xlu0 %v221
        %v223 = vpop.xlane.xlu0 %222
        %v228 = vlaneseq
        %v229 = vshrl.u32 %v228, 7
        %v230 = vsub.s32 0, %v229
        %v231 = vrot.slane %v214, %v230
        %v232 = vlaneseq
        %v233 = vshrl.u32 %v232, 7
        %v234 = vsub.s32 1, %v233
        %v235 = vrot.slane %v214, %v234
        %v236 = vlaneseq
        %v237 = vshrl.u32 %v236, 7
        %v238 = vsub.s32 2, %v237
        %v239 = vrot.slane %v214, %v238
        %v240 = vlaneseq
        %v241 = vshrl.u32 %v240, 7
        %v242 = vsub.s32 3, %v241
        %v243 = vrot.slane %v214, %v242
        %v244 = vlaneseq
        %v245 = vshrl.u32 %v244, 7
        %v246 = vsub.s32 4, %v245
        %v247 = vrot.slane %v214, %v246
        %v248 = vlaneseq
        %v249 = vshrl.u32 %v248, 7
        %v250 = vsub.s32 5, %v249
        %v251 = vrot.slane %v214, %v250
        %v252 = vlaneseq
        %v253 = vshrl.u32 %v252, 7
        %v254 = vsub.s32 6, %v253
        %v255 = vrot.slane %v214, %v254
        %v256 = vlaneseq
        %v257 = vshrl.u32 %v256, 7
        %v258 = vsub.s32 7, %v257
        %v259 = vrot.slane %v214, %v258
        %v260 = vlaneseq
        %v261 = vshrl.u32 %v260, 7
        %v262 = vsub.s32 0, %v261
        %v263 = vrot.slane %v217, %v262
        %v264 = vlaneseq
        %v265 = vshrl.u32 %v264, 7
        %v266 = vsub.s32 1, %v265
        %v267 = vrot.slane %v217, %v266
        %v268 = vlaneseq
        %v269 = vshrl.u32 %v268, 7
        %v270 = vsub.s32 2, %v269
        %v271 = vrot.slane %v217, %v270
        %v272 = vlaneseq
        %v273 = vshrl.u32 %v272, 7
        %v274 = vsub.s32 3, %v273
        %v275 = vrot.slane %v217, %v274
        %v276 = vlaneseq
        %v277 = vshrl.u32 %v276, 7
        %v278 = vsub.s32 4, %v277
        %v279 = vrot.slane %v217, %v278
        %v280 = vlaneseq
        %v281 = vshrl.u32 %v280, 7
        %v282 = vsub.s32 5, %v281
        %v283 = vrot.slane %v217, %v282
        %v284 = vlaneseq
        %v285 = vshrl.u32 %v284, 7
        %v286 = vsub.s32 6, %v285
        %v287 = vrot.slane %v217, %v286
        %v288 = vlaneseq
        %v289 = vshrl.u32 %v288, 7
        %v290 = vsub.s32 7, %v289
        %v291 = vrot.slane %v217, %v290
        %v292 = vlaneseq
        %v293 = vshrl.u32 %v292, 7
        %v294 = vsub.s32 0, %v293
        %v295 = vrot.slane %v220, %v294
        %v296 = vlaneseq
        %v297 = vshrl.u32 %v296, 7
        %v298 = vsub.s32 1, %v297
        %v299 = vrot.slane %v220, %v298
        %v300 = vlaneseq
        %v301 = vshrl.u32 %v300, 7
        %v302 = vsub.s32 2, %v301
        %v303 = vrot.slane %v220, %v302
        %v304 = vlaneseq
        %v305 = vshrl.u32 %v304, 7
        %v306 = vsub.s32 3, %v305
        %v307 = vrot.slane %v220, %v306
        %v308 = vlaneseq
        %v309 = vshrl.u32 %v308, 7
        %v310 = vsub.s32 4, %v309
        %v311 = vrot.slane %v220, %v310
        %v312 = vlaneseq
        %v313 = vshrl.u32 %v312, 7
        %v314 = vsub.s32 5, %v313
        %v315 = vrot.slane %v220, %v314
        %v316 = vlaneseq
        %v317 = vshrl.u32 %v316, 7
        %v318 = vsub.s32 6, %v317
        %v319 = vrot.slane %v220, %v318
        %v320 = vlaneseq
        %v321 = vshrl.u32 %v320, 7
        %v322 = vsub.s32 7, %v321
        %v323 = vrot.slane %v220, %v322
        %v324 = vlaneseq
        %v325 = vshrl.u32 %v324, 7
        %v326 = vsub.s32 0, %v325
        %v327 = vrot.slane %v223, %v326
        %v328 = vlaneseq
        %v329 = vshrl.u32 %v328, 7
        %v330 = vsub.s32 1, %v329
        %v331 = vrot.slane %v223, %v330
        %v332 = vlaneseq
        %v333 = vshrl.u32 %v332, 7
        %v334 = vsub.s32 2, %v333
        %v335 = vrot.slane %v223, %v334
        %v336 = vlaneseq
        %v337 = vshrl.u32 %v336, 7
        %v338 = vsub.s32 3, %v337
        %v339 = vrot.slane %v223, %v338
        %v340 = vlaneseq
        %v341 = vshrl.u32 %v340, 7
        %v342 = vsub.s32 4, %v341
        %v343 = vrot.slane %v223, %v342
        %v344 = vlaneseq
        %v345 = vshrl.u32 %v344, 7
        %v346 = vsub.s32 5, %v345
        %v347 = vrot.slane %v223, %v346
        %v348 = vlaneseq
        %v349 = vshrl.u32 %v348, 7
        %v350 = vsub.s32 6, %v349
        %v351 = vrot.slane %v223, %v350
        %v352 = vlaneseq
        %v353 = vshrl.u32 %v352, 7
        %v354 = vsub.s32 7, %v353
        %v355 = vrot.slane %v223, %v354
        %v356 = vcombine.low %v231, %v235
        %v357 = vcombine.low %v239, %v243
        %v358 = vcombine.low %v247, %v251
        %v359 = vcombine.low %v255, %v259
        %v361 = vunpack.c.l.s4 1966171168
        %v362 = vunpack.c.0.s8 %v361
        %v363 = vlaneseq
        %v364 = vshrl.u32 %v363, 7
        %v365 = vsub.s32 %v362, %v364
        %v366 = vrot.slane %v356, %v365
        %v368 = vunpack.c.l.s4 1966171168
        %v369 = vunpack.c.0.s8 %v368
        %v370 = vlaneseq
        %v371 = vshrl.u32 %v370, 7
        %v372 = vsub.s32 %v369, %v371
        %v373 = vrot.slane %v357, %v372
        %v375 = vunpack.c.l.s4 1966171168
        %v376 = vunpack.c.0.s8 %v375
        %v377 = vlaneseq
        %v378 = vshrl.u32 %v377, 7
        %v379 = vsub.s32 %v376, %v378
        %v380 = vrot.slane %v358, %v379
        %v382 = vunpack.c.l.s4 1966171168
        %v383 = vunpack.c.0.s8 %v382
        %v384 = vlaneseq
        %v385 = vshrl.u32 %v384, 7
        %v386 = vsub.s32 %v383, %v385
        %v387 = vrot.slane %v359, %v386
        %v388 = vcombine.low %v366, %v373
        %v389 = vcombine.low %v380, %v387
        %v391 = vunpack.c.l.s4 1966171168
        %v392 = vunpack.c.0.s8 %v391
        %v393 = vlaneseq
        %v394 = vshrl.u32 %v393, 7
        %v395 = vsub.s32 %v392, %v394
        %v396 = vrot.slane %v388, %v395
        %v398 = vunpack.c.l.s4 1966171168
        %v399 = vunpack.c.0.s8 %v398
        %v400 = vlaneseq
        %v401 = vshrl.u32 %v400, 7
        %v402 = vsub.s32 %v399, %v401
        %v403 = vrot.slane %v389, %v402
        %v404 = vcombine.low %v396, %v403
        %v405 = vcombine.low %v263, %v267
        %v406 = vcombine.low %v271, %v275
        %v407 = vcombine.low %v279, %v283
        %v408 = vcombine.low %v287, %v291
        %v410 = vunpack.c.l.s4 1966171168
        %v411 = vunpack.c.0.s8 %v410
        %v412 = vlaneseq
        %v413 = vshrl.u32 %v412, 7
        %v414 = vsub.s32 %v411, %v413
        %v415 = vrot.slane %v405, %v414
        %v417 = vunpack.c.l.s4 1966171168
        %v418 = vunpack.c.0.s8 %v417
        %v419 = vlaneseq
        %v420 = vshrl.u32 %v419, 7
        %v421 = vsub.s32 %v418, %v420
        %v422 = vrot.slane %v406, %v421
        %v424 = vunpack.c.l.s4 1966171168
        %v425 = vunpack.c.0.s8 %v424
        %v426 = vlaneseq
        %v427 = vshrl.u32 %v426, 7
        %v428 = vsub.s32 %v425, %v427
        %v429 = vrot.slane %v407, %v428
        %v431 = vunpack.c.l.s4 1966171168
        %v432 = vunpack.c.0.s8 %v431
        %v433 = vlaneseq
        %v434 = vshrl.u32 %v433, 7
        %v435 = vsub.s32 %v432, %v434
        %v436 = vrot.slane %v408, %v435
        %v437 = vcombine.low %v415, %v422
        %v438 = vcombine.low %v429, %v436
        %v440 = vunpack.c.l.s4 1966171168
        %v441 = vunpack.c.0.s8 %v440
        %v442 = vlaneseq
        %v443 = vshrl.u32 %v442, 7
        %v444 = vsub.s32 %v441, %v443
        %v445 = vrot.slane %v437, %v444
        %v447 = vunpack.c.l.s4 1966171168
        %v448 = vunpack.c.0.s8 %v447
        %v449 = vlaneseq
        %v450 = vshrl.u32 %v449, 7
        %v451 = vsub.s32 %v448, %v450
        %v452 = vrot.slane %v438, %v451
        %v453 = vcombine.low %v445, %v452
        %v454 = vcombine.low %v295, %v299
        %v455 = vcombine.low %v303, %v307
        %v456 = vcombine.low %v311, %v315
        %v457 = vcombine.low %v319, %v323
        %v459 = vunpack.c.l.s4 1966171168
        %v460 = vunpack.c.0.s8 %v459
        %v461 = vlaneseq
        %v462 = vshrl.u32 %v461, 7
        %v463 = vsub.s32 %v460, %v462
        %v464 = vrot.slane %v454, %v463
        %v466 = vunpack.c.l.s4 1966171168
        %v467 = vunpack.c.0.s8 %v466
        %v468 = vlaneseq
        %v469 = vshrl.u32 %v468, 7
        %v470 = vsub.s32 %v467, %v469
        %v471 = vrot.slane %v455, %v470
        %v473 = vunpack.c.l.s4 1966171168
        %v474 = vunpack.c.0.s8 %v473
        %v475 = vlaneseq
        %v476 = vshrl.u32 %v475, 7
        %v477 = vsub.s32 %v474, %v476
        %v478 = vrot.slane %v456, %v477
        %v480 = vunpack.c.l.s4 1966171168
        %v481 = vunpack.c.0.s8 %v480
        %v482 = vlaneseq
        %v483 = vshrl.u32 %v482, 7
        %v484 = vsub.s32 %v481, %v483
        %v485 = vrot.slane %v457, %v484
        %v486 = vcombine.low %v464, %v471
        %v487 = vcombine.low %v478, %v485
        %v489 = vunpack.c.l.s4 1966171168
        %v490 = vunpack.c.0.s8 %v489
        %v491 = vlaneseq
        %v492 = vshrl.u32 %v491, 7
        %v493 = vsub.s32 %v490, %v492
        %v494 = vrot.slane %v486, %v493
        %v496 = vunpack.c.l.s4 1966171168
        %v497 = vunpack.c.0.s8 %v496
        %v498 = vlaneseq
        %v499 = vshrl.u32 %v498, 7
        %v500 = vsub.s32 %v497, %v499
        %v501 = vrot.slane %v487, %v500
        %v502 = vcombine.low %v494, %v501
        %v503 = vcombine.low %v327, %v331
        %v504 = vcombine.low %v335, %v339
        %v505 = vcombine.low %v343, %v347
        %v506 = vcombine.low %v351, %v355
        %v508 = vunpack.c.l.s4 1966171168
        %v509 = vunpack.c.0.s8 %v508
        %v510 = vlaneseq
        %v511 = vshrl.u32 %v510, 7
        %v512 = vsub.s32 %v509, %v511
        %v513 = vrot.slane %v503, %v512
        %v515 = vunpack.c.l.s4 1966171168
        %v516 = vunpack.c.0.s8 %v515
        %v517 = vlaneseq
        %v518 = vshrl.u32 %v517, 7
        %v519 = vsub.s32 %v516, %v518
        %v520 = vrot.slane %v504, %v519
        %v522 = vunpack.c.l.s4 1966171168
        %v523 = vunpack.c.0.s8 %v522
        %v524 = vlaneseq
        %v525 = vshrl.u32 %v524, 7
        %v526 = vsub.s32 %v523, %v525
        %v527 = vrot.slane %v505, %v526
        %v529 = vunpack.c.l.s4 1966171168
        %v530 = vunpack.c.0.s8 %v529
        %v531 = vlaneseq
        %v532 = vshrl.u32 %v531, 7
        %v533 = vsub.s32 %v530, %v532
        %v534 = vrot.slane %v506, %v533
        %v535 = vcombine.low %v513, %v520
        %v536 = vcombine.low %v527, %v534
        %v538 = vunpack.c.l.s4 1966171168
        %v539 = vunpack.c.0.s8 %v538
        %v540 = vlaneseq
        %v541 = vshrl.u32 %v540, 7
        %v542 = vsub.s32 %v539, %v541
        %v543 = vrot.slane %v535, %v542
        %v545 = vunpack.c.l.s4 1966171168
        %v546 = vunpack.c.0.s8 %v545
        %v547 = vlaneseq
        %v548 = vshrl.u32 %v547, 7
        %v549 = vsub.s32 %v546, %v548
        %v550 = vrot.slane %v536, %v549
        %v551 = vcombine.low %v543, %v550
        %552 = vset.pattern.permute.xlu0 0
        %553 = vperm.xlu0 %552, %v404
        %v554 = vpop.permute.xlu0 %553
        %555 = vset.pattern.permute.xlu0 0
        %556 = vperm.xlu0 %555, %v453
        %v557 = vpop.permute.xlu0 %556
        %558 = vset.pattern.permute.xlu0 0
        %559 = vperm.xlu0 %558, %v502
        %v560 = vpop.permute.xlu0 %559
        %561 = vset.pattern.permute.xlu0 0
        %562 = vperm.xlu0 %561, %v551
        %v563 = vpop.permute.xlu0 %562
        %v564 = vlaneseq
        %v565 = vand.u32 %v564, 127
        %v566 = vlaneseq
        %v567 = vshrl.u32 %v566, 7
        %v568 = vsub.s32 %v565, %v567
        %v569 = vrot.slane %v554, %v568
        %v570 = vadd.s32 %v565, 4294967288
        %v571 = vlaneseq
        %v572 = vshrl.u32 %v571, 7
        %v573 = vsub.s32 %v570, %v572
        %v574 = vrot.slane %v557, %v573
        %vm575 = vcmask 130112
        %v576 = vsel %vm575, %v574, %v569
        %v577 = vadd.s32 %v565, 4294967280
        %v578 = vlaneseq
        %v579 = vshrl.u32 %v578, 7
        %v580 = vsub.s32 %v577, %v579
        %v581 = vrot.slane %v560, %v580
        %vm582 = vcmask 195712
        %v583 = vsel %vm582, %v581, %v576
        %v584 = vadd.s32 %v565, 4294967272
        %v585 = vlaneseq
        %v586 = vshrl.u32 %v585, 7
        %v587 = vsub.s32 %v584, %v586
        %v588 = vrot.slane %v563, %v587
        %vm589 = vcmask 261312
        %v590 = vsel %vm589, %v588, %v583
        %v592 = vunpack.c.l.s4 1966171168
        %v593 = vunpack.c.0.s8 %v592
        %v594 = vlaneseq
        %v595 = vshrl.u32 %v594, 7
        %v596 = vsub.s32 %v593, %v595
        %v597 = vrot.slane %v590, %v596
        %v599 = vunpack.c.l.s4 1966171168
        %v600 = vunpack.c.0.s8 %v599
        %v601 = vlaneseq
        %v602 = vshrl.u32 %v601, 7
        %v603 = vsub.s32 %v600, %v602
        %v604 = vrot.slane %v597, %v603
        %v606 = vadd.f32 %v211, %v604
        %vm607 = vcmask 253952
        %608 = vst.msk [vmem:[#allocation2] sm:$0x1] %vm607, %v606
        %v609 = vld [vmem:[#allocation3] sm:$0x1]
        %v610 = vmax.f32 %v203, %v204
        %611 = vmax.xlane.f32.xlu0 %v610
        %v612 = vpop.xlane.xlu0 %611
        %v613 = vmax.f32 %v205, %v206
        %614 = vmax.xlane.f32.xlu0 %v613
        %v615 = vpop.xlane.xlu0 %614
        %v616 = vmax.f32 %v207, %v208
        %617 = vmax.xlane.f32.xlu0 %v616
        %v618 = vpop.xlane.xlu0 %617
        %v619 = vmax.f32 %v209, %v210
        %620 = vmax.xlane.f32.xlu0 %v619
        %v621 = vpop.xlane.xlu0 %620
        %v626 = vlaneseq
        %v627 = vshrl.u32 %v626, 7
        %v628 = vsub.s32 0, %v627
        %v629 = vrot.slane %v612, %v628
        %v630 = vlaneseq
        %v631 = vshrl.u32 %v630, 7
        %v632 = vsub.s32 1, %v631
        %v633 = vrot.slane %v612, %v632
        %v634 = vlaneseq
        %v635 = vshrl.u32 %v634, 7
        %v636 = vsub.s32 2, %v635
        %v637 = vrot.slane %v612, %v636
        %v638 = vlaneseq
        %v639 = vshrl.u32 %v638, 7
        %v640 = vsub.s32 3, %v639
        %v641 = vrot.slane %v612, %v640
        %v642 = vlaneseq
        %v643 = vshrl.u32 %v642, 7
        %v644 = vsub.s32 4, %v643
        %v645 = vrot.slane %v612, %v644
        %v646 = vlaneseq
        %v647 = vshrl.u32 %v646, 7
        %v648 = vsub.s32 5, %v647
        %v649 = vrot.slane %v612, %v648
        %v650 = vlaneseq
        %v651 = vshrl.u32 %v650, 7
        %v652 = vsub.s32 6, %v651
        %v653 = vrot.slane %v612, %v652
        %v654 = vlaneseq
        %v655 = vshrl.u32 %v654, 7
        %v656 = vsub.s32 7, %v655
        %v657 = vrot.slane %v612, %v656
        %v658 = vlaneseq
        %v659 = vshrl.u32 %v658, 7
        %v660 = vsub.s32 0, %v659
        %v661 = vrot.slane %v615, %v660
        %v662 = vlaneseq
        %v663 = vshrl.u32 %v662, 7
        %v664 = vsub.s32 1, %v663
        %v665 = vrot.slane %v615, %v664
        %v666 = vlaneseq
        %v667 = vshrl.u32 %v666, 7
        %v668 = vsub.s32 2, %v667
        %v669 = vrot.slane %v615, %v668
        %v670 = vlaneseq
        %v671 = vshrl.u32 %v670, 7
        %v672 = vsub.s32 3, %v671
        %v673 = vrot.slane %v615, %v672
        %v674 = vlaneseq
        %v675 = vshrl.u32 %v674, 7
        %v676 = vsub.s32 4, %v675
        %v677 = vrot.slane %v615, %v676
        %v678 = vlaneseq
        %v679 = vshrl.u32 %v678, 7
        %v680 = vsub.s32 5, %v679
        %v681 = vrot.slane %v615, %v680
        %v682 = vlaneseq
        %v683 = vshrl.u32 %v682, 7
        %v684 = vsub.s32 6, %v683
        %v685 = vrot.slane %v615, %v684
        %v686 = vlaneseq
        %v687 = vshrl.u32 %v686, 7
        %v688 = vsub.s32 7, %v687
        %v689 = vrot.slane %v615, %v688
        %v690 = vlaneseq
        %v691 = vshrl.u32 %v690, 7
        %v692 = vsub.s32 0, %v691
        %v693 = vrot.slane %v618, %v692
        %v694 = vlaneseq
        %v695 = vshrl.u32 %v694, 7
        %v696 = vsub.s32 1, %v695
        %v697 = vrot.slane %v618, %v696
        %v698 = vlaneseq
        %v699 = vshrl.u32 %v698, 7
        %v700 = vsub.s32 2, %v699
        %v701 = vrot.slane %v618, %v700
        %v702 = vlaneseq
        %v703 = vshrl.u32 %v702, 7
        %v704 = vsub.s32 3, %v703
        %v705 = vrot.slane %v618, %v704
        %v706 = vlaneseq
        %v707 = vshrl.u32 %v706, 7
        %v708 = vsub.s32 4, %v707
        %v709 = vrot.slane %v618, %v708
        %v710 = vlaneseq
        %v711 = vshrl.u32 %v710, 7
        %v712 = vsub.s32 5, %v711
        %v713 = vrot.slane %v618, %v712
        %v714 = vlaneseq
        %v715 = vshrl.u32 %v714, 7
        %v716 = vsub.s32 6, %v715
        %v717 = vrot.slane %v618, %v716
        %v718 = vlaneseq
        %v719 = vshrl.u32 %v718, 7
        %v720 = vsub.s32 7, %v719
        %v721 = vrot.slane %v618, %v720
        %v722 = vlaneseq
        %v723 = vshrl.u32 %v722, 7
        %v724 = vsub.s32 0, %v723
        %v725 = vrot.slane %v621, %v724
        %v726 = vlaneseq
        %v727 = vshrl.u32 %v726, 7
        %v728 = vsub.s32 1, %v727
        %v729 = vrot.slane %v621, %v728
        %v730 = vlaneseq
        %v731 = vshrl.u32 %v730, 7
        %v732 = vsub.s32 2, %v731
        %v733 = vrot.slane %v621, %v732
        %v734 = vlaneseq
        %v735 = vshrl.u32 %v734, 7
        %v736 = vsub.s32 3, %v735
        %v737 = vrot.slane %v621, %v736
        %v738 = vlaneseq
        %v739 = vshrl.u32 %v738, 7
        %v740 = vsub.s32 4, %v739
        %v741 = vrot.slane %v621, %v740
        %v742 = vlaneseq
        %v743 = vshrl.u32 %v742, 7
        %v744 = vsub.s32 5, %v743
        %v745 = vrot.slane %v621, %v744
        %v746 = vlaneseq
        %v747 = vshrl.u32 %v746, 7
        %v748 = vsub.s32 6, %v747
        %v749 = vrot.slane %v621, %v748
        %v750 = vlaneseq
        %v751 = vshrl.u32 %v750, 7
        %v752 = vsub.s32 7, %v751
        %v753 = vrot.slane %v621, %v752
        %v754 = vcombine.low %v629, %v633
        %v755 = vcombine.low %v637, %v641
        %v756 = vcombine.low %v645, %v649
        %v757 = vcombine.low %v653, %v657
        %v759 = vunpack.c.l.s4 1966171168
        %v760 = vunpack.c.0.s8 %v759
        %v761 = vlaneseq
        %v762 = vshrl.u32 %v761, 7
        %v763 = vsub.s32 %v760, %v762
        %v764 = vrot.slane %v754, %v763
        %v766 = vunpack.c.l.s4 1966171168
        %v767 = vunpack.c.0.s8 %v766
        %v768 = vlaneseq
        %v769 = vshrl.u32 %v768, 7
        %v770 = vsub.s32 %v767, %v769
        %v771 = vrot.slane %v755, %v770
        %v773 = vunpack.c.l.s4 1966171168
        %v774 = vunpack.c.0.s8 %v773
        %v775 = vlaneseq
        %v776 = vshrl.u32 %v775, 7
        %v777 = vsub.s32 %v774, %v776
        %v778 = vrot.slane %v756, %v777
        %v780 = vunpack.c.l.s4 1966171168
        %v781 = vunpack.c.0.s8 %v780
        %v782 = vlaneseq
        %v783 = vshrl.u32 %v782, 7
        %v784 = vsub.s32 %v781, %v783
        %v785 = vrot.slane %v757, %v784
        %v786 = vcombine.low %v764, %v771
        %v787 = vcombine.low %v778, %v785
        %v789 = vunpack.c.l.s4 1966171168
        %v790 = vunpack.c.0.s8 %v789
        %v791 = vlaneseq
        %v792 = vshrl.u32 %v791, 7
        %v793 = vsub.s32 %v790, %v792
        %v794 = vrot.slane %v786, %v793
        %v796 = vunpack.c.l.s4 1966171168
        %v797 = vunpack.c.0.s8 %v796
        %v798 = vlaneseq
        %v799 = vshrl.u32 %v798, 7
        %v800 = vsub.s32 %v797, %v799
        %v801 = vrot.slane %v787, %v800
        %v802 = vcombine.low %v794, %v801
        %v803 = vcombine.low %v661, %v665
        %v804 = vcombine.low %v669, %v673
        %v805 = vcombine.low %v677, %v681
        %v806 = vcombine.low %v685, %v689
        %v808 = vunpack.c.l.s4 1966171168
        %v809 = vunpack.c.0.s8 %v808
        %v810 = vlaneseq
        %v811 = vshrl.u32 %v810, 7
        %v812 = vsub.s32 %v809, %v811
        %v813 = vrot.slane %v803, %v812
        %v815 = vunpack.c.l.s4 1966171168
        %v816 = vunpack.c.0.s8 %v815
        %v817 = vlaneseq
        %v818 = vshrl.u32 %v817, 7
        %v819 = vsub.s32 %v816, %v818
        %v820 = vrot.slane %v804, %v819
        %v822 = vunpack.c.l.s4 1966171168
        %v823 = vunpack.c.0.s8 %v822
        %v824 = vlaneseq
        %v825 = vshrl.u32 %v824, 7
        %v826 = vsub.s32 %v823, %v825
        %v827 = vrot.slane %v805, %v826
        %v829 = vunpack.c.l.s4 1966171168
        %v830 = vunpack.c.0.s8 %v829
        %v831 = vlaneseq
        %v832 = vshrl.u32 %v831, 7
        %v833 = vsub.s32 %v830, %v832
        %v834 = vrot.slane %v806, %v833
        %v835 = vcombine.low %v813, %v820
        %v836 = vcombine.low %v827, %v834
        %v838 = vunpack.c.l.s4 1966171168
        %v839 = vunpack.c.0.s8 %v838
        %v840 = vlaneseq
        %v841 = vshrl.u32 %v840, 7
        %v842 = vsub.s32 %v839, %v841
        %v843 = vrot.slane %v835, %v842
        %v845 = vunpack.c.l.s4 1966171168
        %v846 = vunpack.c.0.s8 %v845
        %v847 = vlaneseq
        %v848 = vshrl.u32 %v847, 7
        %v849 = vsub.s32 %v846, %v848
        %v850 = vrot.slane %v836, %v849
        %v851 = vcombine.low %v843, %v850
        %v852 = vcombine.low %v693, %v697
        %v853 = vcombine.low %v701, %v705
        %v854 = vcombine.low %v709, %v713
        %v855 = vcombine.low %v717, %v721
        %v857 = vunpack.c.l.s4 1966171168
        %v858 = vunpack.c.0.s8 %v857
        %v859 = vlaneseq
        %v860 = vshrl.u32 %v859, 7
        %v861 = vsub.s32 %v858, %v860
        %v862 = vrot.slane %v852, %v861
        %v864 = vunpack.c.l.s4 1966171168
        %v865 = vunpack.c.0.s8 %v864
        %v866 = vlaneseq
        %v867 = vshrl.u32 %v866, 7
        %v868 = vsub.s32 %v865, %v867
        %v869 = vrot.slane %v853, %v868
        %v871 = vunpack.c.l.s4 1966171168
        %v872 = vunpack.c.0.s8 %v871
        %v873 = vlaneseq
        %v874 = vshrl.u32 %v873, 7
        %v875 = vsub.s32 %v872, %v874
        %v876 = vrot.slane %v854, %v875
        %v878 = vunpack.c.l.s4 1966171168
        %v879 = vunpack.c.0.s8 %v878
        %v880 = vlaneseq
        %v881 = vshrl.u32 %v880, 7
        %v882 = vsub.s32 %v879, %v881
        %v883 = vrot.slane %v855, %v882
        %v884 = vcombine.low %v862, %v869
        %v885 = vcombine.low %v876, %v883
        %v887 = vunpack.c.l.s4 1966171168
        %v888 = vunpack.c.0.s8 %v887
        %v889 = vlaneseq
        %v890 = vshrl.u32 %v889, 7
        %v891 = vsub.s32 %v888, %v890
        %v892 = vrot.slane %v884, %v891
        %v894 = vunpack.c.l.s4 1966171168
        %v895 = vunpack.c.0.s8 %v894
        %v896 = vlaneseq
        %v897 = vshrl.u32 %v896, 7
        %v898 = vsub.s32 %v895, %v897
        %v899 = vrot.slane %v885, %v898
        %v900 = vcombine.low %v892, %v899
        %v901 = vcombine.low %v725, %v729
        %v902 = vcombine.low %v733, %v737
        %v903 = vcombine.low %v741, %v745
        %v904 = vcombine.low %v749, %v753
        %v906 = vunpack.c.l.s4 1966171168
        %v907 = vunpack.c.0.s8 %v906
        %v908 = vlaneseq
        %v909 = vshrl.u32 %v908, 7
        %v910 = vsub.s32 %v907, %v909
        %v911 = vrot.slane %v901, %v910
        %v913 = vunpack.c.l.s4 1966171168
        %v914 = vunpack.c.0.s8 %v913
        %v915 = vlaneseq
        %v916 = vshrl.u32 %v915, 7
        %v917 = vsub.s32 %v914, %v916
        %v918 = vrot.slane %v902, %v917
        %v920 = vunpack.c.l.s4 1966171168
        %v921 = vunpack.c.0.s8 %v920
        %v922 = vlaneseq
        %v923 = vshrl.u32 %v922, 7
        %v924 = vsub.s32 %v921, %v923
        %v925 = vrot.slane %v903, %v924
        %v927 = vunpack.c.l.s4 1966171168
        %v928 = vunpack.c.0.s8 %v927
        %v929 = vlaneseq
        %v930 = vshrl.u32 %v929, 7
        %v931 = vsub.s32 %v928, %v930
        %v932 = vrot.slane %v904, %v931
        %v933 = vcombine.low %v911, %v918
        %v934 = vcombine.low %v925, %v932
        %v936 = vunpack.c.l.s4 1966171168
        %v937 = vunpack.c.0.s8 %v936
        %v938 = vlaneseq
        %v939 = vshrl.u32 %v938, 7
        %v940 = vsub.s32 %v937, %v939
        %v941 = vrot.slane %v933, %v940
        %v943 = vunpack.c.l.s4 1966171168
        %v944 = vunpack.c.0.s8 %v943
        %v945 = vlaneseq
        %v946 = vshrl.u32 %v945, 7
        %v947 = vsub.s32 %v944, %v946
        %v948 = vrot.slane %v934, %v947
        %v949 = vcombine.low %v941, %v948
        %950 = vset.pattern.permute.xlu0 0
        %951 = vperm.xlu0 %950, %v802
        %v952 = vpop.permute.xlu0 %951
        %953 = vset.pattern.permute.xlu0 0
        %954 = vperm.xlu0 %953, %v851
        %v955 = vpop.permute.xlu0 %954
        %956 = vset.pattern.permute.xlu0 0
        %957 = vperm.xlu0 %956, %v900
        %v958 = vpop.permute.xlu0 %957
        %959 = vset.pattern.permute.xlu0 0
        %960 = vperm.xlu0 %959, %v949
        %v961 = vpop.permute.xlu0 %960
        %v962 = vlaneseq
        %v963 = vshrl.u32 %v962, 7
        %v964 = vsub.s32 %v565, %v963
        %v965 = vrot.slane %v952, %v964
        %v966 = vlaneseq
        %v967 = vshrl.u32 %v966, 7
        %v968 = vsub.s32 %v570, %v967
        %v969 = vrot.slane %v955, %v968
        %v970 = vsel %vm575, %v969, %v965
        %v971 = vlaneseq
        %v972 = vshrl.u32 %v971, 7
        %v973 = vsub.s32 %v577, %v972
        %v974 = vrot.slane %v958, %v973
        %v975 = vsel %vm582, %v974, %v970
        %v976 = vlaneseq
        %v977 = vshrl.u32 %v976, 7
        %v978 = vsub.s32 %v584, %v977
        %v979 = vrot.slane %v961, %v978
        %v980 = vsel %vm589, %v979, %v975
        %v982 = vunpack.c.l.s4 1966171168
        %v983 = vunpack.c.0.s8 %v982
        %v984 = vlaneseq
        %v985 = vshrl.u32 %v984, 7
        %v986 = vsub.s32 %v983, %v985
        %v987 = vrot.slane %v980, %v986
        %v989 = vunpack.c.l.s4 1966171168
        %v990 = vunpack.c.0.s8 %v989
        %v991 = vlaneseq
        %v992 = vshrl.u32 %v991, 7
        %v993 = vsub.s32 %v990, %v992
        %v994 = vrot.slane %v987, %v993
        %v996 = vmax.f32 %v609, %v994
        %997 = vst.msk [vmem:[#allocation3] sm:$0x1] %vm607, %v996
        // Predicated region
        $region37: #{channel_attention.1} parent=31 // pred_check
          %p998 = pneg %p196
        $region38: #{channel_attention.1} parent=31 // pred_check_branch
          %1000 = sbr.rel (%p998) target = $region40
        $region39: #{channel_attention.1} parent=31 // pred_region
          %v1001 = vld [vmem:[#allocation2] sm:$0x1]
          %v1002 = vmul.f32 %v1001, 0.00390625
          %v1003 = vld [vmem:[#allocation3] sm:$0x1]
          %v1005 = vlaneseq
          %v1006 = vshrl.u32 %v1005, 7
          %v1007 = vsub.s32 0, %v1006
          %v1008 = vrot.slane %v1003, %v1007
          %vm1010 = vcmask 1040384
          %v1011 = vsel %vm1010, %v1002, %v1008
          %v1012 = vld [vmem:[%s1] sm:$0xff]
          %v1013 = vld [vmem:[%s1 + $0x8] sm:$0xff]
          %v1014 = vld [vmem:[%s1 + $0x10] sm:$0xff]
          %v1015 = vld [vmem:[%s1 + $0x18] sm:$0xff]
          %vm1016 = vcmask 261120
          %v1018 = vsel %vm1016, %v1011, 0
          %1020 = vmatprep.subr.mxu0 0.0
          %1021 = vmatpush1.msra.mxu0 %v1012
          %1022 = vmatprep.subr.mxu0 0.0
          %1023 = vmatpush1.msra.mxu0 %v1013
          %1024 = vmatprep.subr.mxu0 0.0
          %1025 = vmatpush1.msra.mxu0 %v1014
          %1026 = vmatprep.subr.mxu0 0.0
          %1027 = vmatpush1.msra.mxu0 %v1015
          %1028 = vmatprep.subr.mxu0 0.0
          %1029 = vmatpush1.msra.mxu0 0.0
          %1030 = vmatprep.subr.mxu0 0.0
          %1031 = vmatpush1.msra.mxu0 0.0
          %1032 = vmatprep.subr.mxu0 0.0
          %1033 = vmatpush1.msra.mxu0 0.0
          %1034 = vmatprep.subr.mxu0 0.0
          %1035 = vmatpush1.msra.mxu0 0.0
          %1036 = vmatprep.subr.mxu0 0.0
          %1037 = vmatpush1.msra.mxu0 0.0
          %1038 = vmatprep.subr.mxu0 0.0
          %1039 = vmatpush1.msra.mxu0 0.0
          %1040 = vmatprep.subr.mxu0 0.0
          %1041 = vmatpush1.msra.mxu0 0.0
          %1042 = vmatprep.subr.mxu0 0.0
          %1043 = vmatpush1.msra.mxu0 0.0
          %1044 = vmatprep.subr.mxu0 0.0
          %1045 = vmatpush1.msra.mxu0 0.0
          %1046 = vmatprep.subr.mxu0 0.0
          %1047 = vmatpush1.msra.mxu0 0.0
          %1048 = vmatprep.subr.mxu0 0.0
          %1049 = vmatpush1.msra.mxu0 0.0
          %1050 = vmatprep.subr.mxu0 0.0
          %1051 = vmatpush1.msra.mxu0 0.0
          %1052 = vmatprep.subr.mxu0 0.0
          %1053 = vmatpush1.msra.mxu0 0.0
          %1054 = vmatprep.subr.mxu0 0.0
          %1055 = vmatpush1.msra.mxu0 0.0
          %1056 = vmatprep.subr.mxu0 0.0
          %1057 = vmatpush1.msra.mxu0 0.0
          %1058 = vmatprep.subr.mxu0 0.0
          %1059 = vmatpush1.msra.mxu0 0.0
          %1060 = vmatprep.subr.mxu0 0.0
          %1061 = vmatpush1.msra.mxu0 0.0
          %1062 = vmatprep.subr.mxu0 0.0
          %1063 = vmatpush1.msra.mxu0 0.0
          %1064 = vmatprep.subr.mxu0 0.0
          %1065 = vmatpush1.msra.mxu0 0.0
          %1066 = vmatprep.subr.mxu0 0.0
          %1067 = vmatpush1.msra.mxu0 0.0
          %1068 = vmatprep.subr.mxu0 0.0
          %1069 = vmatpush1.msra.mxu0 0.0
          %1070 = vmatprep.subr.mxu0 0.0
          %1071 = vmatpush1.msra.mxu0 0.0
          %1072 = vmatprep.subr.mxu0 0.0
          %1073 = vmatpush1.msra.mxu0 0.0
          %1074 = vmatprep.subr.mxu0 0.0
          %1075 = vmatpush1.msra.mxu0 0.0
          %1076 = vmatprep.subr.mxu0 0.0
          %1077 = vmatpush1.msra.mxu0 0.0
          %1078 = vmatprep.subr.mxu0 0.0
          %1079 = vmatpush1.msra.mxu0 0.0
          %1080 = vmatprep.subr.mxu0 0.0
          %1081 = vmatpush1.msra.mxu0 0.0
          %1082 = vmatprep.subr.mxu0 0.0
          %1083 = vmatpush1.msra.mxu0 0.0
          %1084 = vmatprep.mubr.f32.mxu0 0.0
          %1085 = vmatmul.mubr.f32.gmra.mrb[0].mxu0 %v1018
          %v1086 = vpop.f32.mrb[0].mxu0
          %v1087 = vadd.f32 0.0, %v1086
          %v1088 = vpop.f32.mrb[0].mxu0
          %1089 = vdwg.mxu0
          %v1090 = vmax.f32 %v1087, 0.0
          %v1091 = vld [vmem:[%s2] sm:$0x3]
          %vm1092 = vcmask 15360
          %v1094 = vsel %vm1092, %v1090, 0
          %vm1096 = vcmask 1041408
          %v1098 = vsel %vm1096, %v1091, 0
          %1100 = vmatprep.subr.mxu0 0.0
          %1101 = vmatpush1.msra.mxu0 %v1098
          %1102 = vmatprep.subr.mxu0 0.0
          %1103 = vmatpush1.msra.mxu0 0.0
          %1104 = vmatprep.subr.mxu0 0.0
          %1105 = vmatpush1.msra.mxu0 0.0
          %1106 = vmatprep.subr.mxu0 0.0
          %1107 = vmatpush1.msra.mxu0 0.0
          %1108 = vmatprep.subr.mxu0 0.0
          %1109 = vmatpush1.msra.mxu0 0.0
          %1110 = vmatprep.subr.mxu0 0.0
          %1111 = vmatpush1.msra.mxu0 0.0
          %1112 = vmatprep.subr.mxu0 0.0
          %1113 = vmatpush1.msra.mxu0 0.0
          %1114 = vmatprep.subr.mxu0 0.0
          %1115 = vmatpush1.msra.mxu0 0.0
          %1116 = vmatprep.subr.mxu0 0.0
          %1117 = vmatpush1.msra.mxu0 0.0
          %1118 = vmatprep.subr.mxu0 0.0
          %1119 = vmatpush1.msra.mxu0 0.0
          %1120 = vmatprep.subr.mxu0 0.0
          %1121 = vmatpush1.msra.mxu0 0.0
          %1122 = vmatprep.subr.mxu0 0.0
          %1123 = vmatpush1.msra.mxu0 0.0
          %1124 = vmatprep.subr.mxu0 0.0
          %1125 = vmatpush1.msra.mxu0 0.0
          %1126 = vmatprep.subr.mxu0 0.0
          %1127 = vmatpush1.msra.mxu0 0.0
          %1128 = vmatprep.subr.mxu0 0.0
          %1129 = vmatpush1.msra.mxu0 0.0
          %1130 = vmatprep.subr.mxu0 0.0
          %1131 = vmatpush1.msra.mxu0 0.0
          %1132 = vmatprep.subr.mxu0 0.0
          %1133 = vmatpush1.msra.mxu0 0.0
          %1134 = vmatprep.subr.mxu0 0.0
          %1135 = vmatpush1.msra.mxu0 0.0
          %1136 = vmatprep.subr.mxu0 0.0
          %1137 = vmatpush1.msra.mxu0 0.0
          %1138 = vmatprep.subr.mxu0 0.0
          %1139 = vmatpush1.msra.mxu0 0.0
          %1140 = vmatprep.subr.mxu0 0.0
          %1141 = vmatpush1.msra.mxu0 0.0
          %1142 = vmatprep.subr.mxu0 0.0
          %1143 = vmatpush1.msra.mxu0 0.0
          %1144 = vmatprep.subr.mxu0 0.0
          %1145 = vmatpush1.msra.mxu0 0.0
          %1146 = vmatprep.subr.mxu0 0.0
          %1147 = vmatpush1.msra.mxu0 0.0
          %1148 = vmatprep.subr.mxu0 0.0
          %1149 = vmatpush1.msra.mxu0 0.0
          %1150 = vmatprep.subr.mxu0 0.0
          %1151 = vmatpush1.msra.mxu0 0.0
          %1152 = vmatprep.subr.mxu0 0.0
          %1153 = vmatpush1.msra.mxu0 0.0
          %1154 = vmatprep.subr.mxu0 0.0
          %1155 = vmatpush1.msra.mxu0 0.0
          %1156 = vmatprep.subr.mxu0 0.0
          %1157 = vmatpush1.msra.mxu0 0.0
          %1158 = vmatprep.subr.mxu0 0.0
          %1159 = vmatpush1.msra.mxu0 0.0
          %1160 = vmatprep.subr.mxu0 0.0
          %1161 = vmatpush1.msra.mxu0 0.0
          %1162 = vmatprep.subr.mxu0 0.0
          %1163 = vmatpush1.msra.mxu0 0.0
          %1164 = vmatprep.mubr.f32.mxu0 0.0
          %1165 = vmatmul.mubr.f32.gmra.mrb[0].mxu0 %v1094
          %v1166 = vpop.f32.mrb[0].mxu0
          %v1167 = vadd.f32 0.0, %v1166
          %v1168 = vpop.f32.mrb[0].mxu0
          %1169 = vdwg.mxu0
          %v1171 = vrot.slane %v1167, 1
          %v1173 = vadd.f32 %v1167, %v1171
          %v1174 = vxor.u32 %v1173, 2147483648
          %v1175 = vmul.f32 %v1174, 1.442695
          %v1176 = vpow.pop %v1175
          %v1177 = vadd.f32 %v1176, 1.0
          %v1178 = vrcp.pop %v1177
          %v1179 = vmul.f32 1.0, %v1178
          %1180 = vst.msk [vmem:[%s185] sm:$0x1] %vm607, %v1179
        $region40: #{channel_attention.1} parent=31 // pred_fallthru
          _
        %s1181 = sand.u32 %s107, 1
        %s1182 = scalar_lea.sflag [#allocation5], %s1181
        %s1183 = sand.u32 %s107, 1
        %s1184 = scalar_lea.vmem [#allocation4], %s1183
        // Predicated region
        $region41: #{channel_attention.1} parent=31 // pred_check
          %p1185 = pneg %p117
        $region42: #{channel_attention.1} parent=31 // pred_check_branch
          %1187 = sbr.rel (%p1185) target = $region44
        $region43: #{channel_attention.1} parent=31 // pred_region
          %s1189 = ssub.s32 16, 16
          %1190 = vsyncadd %s1182, %s1189
          %s1191 = smul.addr %s21, 16
          %s1192 = scalar_lea.hbm %s3, %s1191
          %s1194 = sshll.u32 %s1184, 4
          %s1195 = int_to_ptr.vmem [resolvable:$true] %s1194
          %1197 = dma.vmem_to_hbm [thread:$0]  %s1195, 16, %s1192, %s1182
        $region44: #{channel_attention.1} parent=31 // pred_fallthru
          _
      $region32: #{channel_attention.1} parent=5 // pred_fallthru
        _
      %p1198 = scmp.le.s32.totalorder 2, %s12
      // Predicated region
      $region45: #{channel_attention.1} parent=5 // pred_check
        %p1199 = pneg %p1198
      $region46: #{channel_attention.1} parent=5 // pred_check_branch
        %1201 = sbr.rel (%p1199) target = $region48
      $region47: #{channel_attention.1} parent=5 // pred_region
        %s1202 = ssub.s32 %s12, 2
        // Predicated region
        $region49: #{channel_attention.1} parent=47 // pred_check
          %p1203 = pneg %p123
        $region50: #{channel_attention.1} parent=47 // pred_check_branch
          %1205 = sbr.rel (%p1203) target = $region52
        $region51: #{channel_attention.1} parent=47 // pred_region
          %s1206 = sand.u32 %s108, 1
          %s1207 = scalar_lea.sflag [#allocation5], %s1206
          %s1208 = sand.u32 %s108, 1
          %s1209 = scalar_lea.vmem [#allocation4], %s1208
          %1210 = dma.done %s1207, 16
        $region52: #{channel_attention.1} parent=47 // pred_fallthru
          _
      $region48: #{channel_attention.1} parent=5 // pred_fallthru
        _
    $region6: #{channel_attention.1} parent=1 // loop_footer
      %s16 = sadd.s32 1, %s12
    $region7: #{channel_attention.1} parent=1 // loop_footer_branch
      %11 = sbr.rel target = $region3
    $region8: #{channel_attention.1} parent=1 // loop_exit
      _
    %1211 = vsyncpa [#allocation5], 1
    %s1212 = scalar_lea.sflag [#allocation5], 1
    %1213 = vsyncpa %s1212, 1

</llo_original>
